<compile_context>
chip_gen: v5e
topology: v5e:2x2
jax: 0.10.0
libtpu: 0.0.40
codegen_flags: <defaults>
</compile_context>

<pallas_src>
import functools

import jax
import jax.numpy as jnp
from jax import lax
from jax.experimental import pallas as pl
from jax.experimental.pallas import tpu as pltpu


def _conv3x3_kernel(x_ref, w_ref, b_ref, m_ref, o_ref, patch_ref, *, W, Cin, Cin_p):
    # x_ref:     (1, Cin, L)       channel-major activations, L = TB*H*W on the lane axis
    # w_ref:     (Cout, 9*Cin_p)   tap-major folded weights, bf16, resident across grid steps
    # b_ref:     (Cout, 1)         bias, f32
    # m_ref:     (9, L)            per-tap SAME-padding border masks (already tiled over TB images)
    # o_ref:     (1, Cout, L)      output (flattened NCHW per image segment), lane-dense stores
    # patch_ref: (9*Cin_p, L) f32  VMEM scratch holding the 9 shifted slabs
    L = x_ref.shape[2]

    x = x_ref[0]                                            # (Cin, L), f32
    if Cin_p != Cin:                                        # static branch: in-kernel channel pad
        x = jnp.concatenate(
            [x, jnp.zeros((Cin_p - Cin, L), dtype=x.dtype)], axis=0)

    # Build the 9 shifted+masked tap slabs with XLU rolls; write each one straight into the
    # scratch so only one slab is live as a value at a time (bounds vreg pressure, no concat).
    for kh in range(3):
        dh = kh - 1
        for kw in range(3):
            dw = kw - 1
            tap = kh * 3 + kw
            s = dh * W + dw                                 # flat-index offset of this tap
            xs = x if s == 0 else pltpu.roll(x, shift=(-s) % L, axis=1)
            # Mask zeroes halo positions (and any cross-image wrap introduced by lane folding).
            patch_ref[pl.ds(tap * Cin_p, Cin_p), :] = xs * m_ref[tap:tap + 1, :]

    # Single MXU matmul, bf16 operands (native MXU rate on all generations), f32 accumulation.
    acc = jnp.dot(w_ref[...], patch_ref[...].astype(jnp.bfloat16),
                  preferred_element_type=jnp.float32)        # (Cout, L)
    acc = acc + b_ref[...]                                   # per-Cout-row broadcast, added once
    o_ref[0, :, :] = acc.astype(o_ref.dtype)


def make_pred_conv(weight_oihw, bias, H, W, *, batch_per_step=1):
    """One-time setup for Pred_conv forward (3x3 conv, stride 1, padding 1).

    Folds the PyTorch-layout weights, builds the per-tap SAME-padding masks once, and returns a
    jitted forward(x) closure. `batch_per_step` (TB) images are folded onto the lane axis per grid
    step; on v7x keep N // TB >= 2 so both TensorCores receive work.
    """
    Cout, Cin = int(weight_oihw.shape[0]), int(weight_oihw.shape[1])
    HW = H * W
    TB = int(batch_per_step)
    L = TB * HW
    Cin_p = ((Cin + 7) // 8) * 8

    # ---- one-time weight folding / bias reshape (hoisted out of the per-forward path) ----
    # (Cout, Cin, 3, 3) -> (Cout, 3, 3, Cin_p) -> (Cout, 9*Cin_p); column index = tap*Cin_p + c.
    w = jnp.transpose(weight_oihw, (0, 2, 3, 1))
    if Cin_p != Cin:
        w = jnp.pad(w, ((0, 0), (0, 0), (0, 0), (0, Cin_p - Cin)))
    w2 = w.reshape(Cout, 9 * Cin_p).astype(jnp.bfloat16)     # bf16 MXU operand
    b2 = bias.reshape(Cout, 1).astype(jnp.float32)

    # ---- one-time per-tap validity masks for SAME padding, tiled over the TB folded images ----
    rr = jnp.arange(HW, dtype=jnp.int32) // W
    cc = jnp.arange(HW, dtype=jnp.int32) % W
    tap_masks = []
    for kh in range(3):
        dh = kh - 1
        for kw in range(3):
            dw = kw - 1
            m = jnp.ones((HW,), dtype=bool)
            if dh == -1:
                m = m & (rr > 0)
            elif dh == 1:
                m = m & (rr < H - 1)
            if dw == -1:
                m = m & (cc > 0)
            elif dw == 1:
                m = m & (cc < W - 1)
            tap_masks.append(m)
    masks = jnp.stack(tap_masks, axis=0).astype(jnp.float32)  # (9, HW)
    masks = jnp.tile(masks, (1, TB))                           # (9, L)

    kernel = functools.partial(_conv3x3_kernel, W=W, Cin=Cin, Cin_p=Cin_p)

    @jax.jit
    def forward(x_nchw):
        N = x_nchw.shape[0]
        assert x_nchw.shape == (N, Cin, H, W), "unexpected input shape"
        assert N % TB == 0, "batch must be divisible by batch_per_step"
        NB = N // TB

        # (N, Cin, H, W) -> (NB, Cin, TB*HW) with lane index = b_local*HW + p.
        # (For TB == 1 the transpose is a free axis-1 swap.)
        x_cm = x_nchw.reshape(NB, TB, Cin, HW).transpose(0, 2, 1, 3).reshape(NB, Cin, L)

        flops = 2 * N * Cout * 9 * Cin_p * HW
        bytes_accessed = (x_nchw.size * 4 + w2.size * 2 + b2.size * 4
                          + masks.size * 4 + N * Cout * HW * 4)

        out_cm = pl.pallas_call(
            kernel,
            out_shape=jax.ShapeDtypeStruct((NB, Cout, L), jnp.float32),
            grid_spec=pltpu.PrefetchScalarGridSpec(
                num_scalar_prefetch=0,
                grid=(NB,),
                in_specs=[
                    pl.BlockSpec((1, Cin, L), lambda n: (n, 0, 0)),
                    pl.BlockSpec((Cout, 9 * Cin_p), lambda n: (0, 0)),
                    pl.BlockSpec((Cout, 1), lambda n: (0, 0)),
                    pl.BlockSpec((9, L), lambda n: (0, 0)),
                ],
                out_specs=pl.BlockSpec((1, Cout, L), lambda n: (n, 0, 0)),
                scratch_shapes=[pltpu.VMEM((9 * Cin_p, L), jnp.float32)],
            ),
            compiler_params=pltpu.CompilerParams(
                dimension_semantics=("parallel",),
                vmem_limit_bytes=32 * 1024 * 1024),
            cost_estimate=pl.CostEstimate(
                flops=flops, transcendentals=0, bytes_accessed=bytes_accessed),
        )(x_cm, w2, b2, masks)

        # (NB, Cout, TB*HW) -> (N, Cout, H, W). For TB == 1 this is a pure (free) reshape.
        out = out_cm.reshape(NB, Cout, TB, HW).transpose(0, 2, 1, 3)
        return out.reshape(N, Cout, H, W)

    return forward


def _reference_conv(x_nchw, weight_oihw, bias):
    out = lax.conv_general_dilated(
        x_nchw, weight_oihw,
        window_strides=(1, 1),
        padding=((1, 1), (1, 1)),
        dimension_numbers=("NCHW", "OIHW", "NCHW"),
        precision=lax.Precision.HIGHEST)
    return out + bias.reshape(1, -1, 1, 1)


if __name__ == "__main__":
    # Small deterministic setup: Pred_conv(in_channels=4, out_channels=8)
    N, Cin, Cout, H, W = 2, 4, 8, 16, 16

    key = jax.random.PRNGKey(0)
    kx, kw, kb = jax.random.split(key, 3)

    x = jax.random.normal(kx, (N, Cin, H, W), dtype=jnp.float32)
    # Deterministic "Kaiming-uniform-like" init (bound = 1/sqrt(fan_in)), matching nn.Conv2d.
    fan_in = Cin * 3 * 3
    bound = 1.0 / (fan_in ** 0.5)
    weight = jax.random.uniform(kw, (Cout, Cin, 3, 3), jnp.float32,
                                minval=-bound, maxval=bound)
    bias = jax.random.uniform(kb, (Cout,), jnp.float32,
                              minval=-bound, maxval=bound)

    ref = jax.block_until_ready(_reference_conv(x, weight, bias))

    # Variant A: one image per grid step (grid=(2,) keeps both v7x TensorCores busy).
    fwd_grid = make_pred_conv(weight, bias, H, W, batch_per_step=1)
    out_a = jax.block_until_ready(fwd_grid(x))
    assert out_a.shape == (N, Cout, H, W)
    err_a = float(jnp.max(jnp.abs(out_a - ref)))
    assert jnp.allclose(out_a, ref, atol=3e-2, rtol=3e-2), err_a

    # Variant B: whole batch folded onto the lane axis (grid=(1,), one fat MXU pass).
    fwd_folded = make_pred_conv(weight, bias, H, W, batch_per_step=N)
    out_b = jax.block_until_ready(fwd_folded(x))
    assert out_b.shape == (N, Cout, H, W)
    err_b = float(jnp.max(jnp.abs(out_b - ref)))
    assert jnp.allclose(out_b, ref, atol=3e-2, rtol=3e-2), err_b

    print("KERNEL_OK")
</pallas_src>

<mosaic_0001>
module attributes {stable_mosaic.version = 11 : i64} {
  func.func @_conv3x3_kernel(%arg0: i32, %arg1: memref<1x4x256xf32, #tpu.memory_space<vmem>>, %arg2: memref<8x72xbf16, #tpu.memory_space<vmem>>, %arg3: memref<8x1xf32, #tpu.memory_space<vmem>>, %arg4: memref<9x256xf32, #tpu.memory_space<vmem>>, %arg5: memref<1x8x256xf32, #tpu.memory_space<vmem>>, %arg6: memref<72x256xf32, #tpu.memory_space<vmem>>) attributes {dimension_semantics = [#tpu.dimension_semantics<parallel>], iteration_bounds = array<i64: 2>, scalar_prefetch = 0 : i64, scratch_operands = 1 : i64, tpu.core_type = #tpu.core_type<tc>, window_params = [{transform_indices = @transform_0, window_bounds = array<i64: 1, 4, 256>}, {pipeline_mode = #tpu.pipeline_mode<synchronous>, transform_indices = @transform_1, window_bounds = array<i64: 8, 72>}, {pipeline_mode = #tpu.pipeline_mode<synchronous>, transform_indices = @transform_2, window_bounds = array<i64: 8, 1>}, {pipeline_mode = #tpu.pipeline_mode<synchronous>, transform_indices = @transform_3, window_bounds = array<i64: 9, 256>}, {transform_indices = @transform_4, window_bounds = array<i64: 1, 8, 256>}]} {
    %c0 = arith.constant 0 : index
    %c0_0 = arith.constant 0 : index
    %c0_1 = arith.constant 0 : index
    %0 = vector.load %arg1[%c0, %c0_0, %c0_1] : memref<1x4x256xf32, #tpu.memory_space<vmem>>, vector<1x4x256xf32>
    %1 = vector.shape_cast %0 : vector<1x4x256xf32> to vector<4x256xf32>
    %cst = arith.constant 0.000000e+00 : f32
    %2 = vector.broadcast %cst : f32 to vector<4x256xf32>
    %3 = tpu.concatenate %1, %2 in 0 : vector<4x256xf32>, vector<4x256xf32> -> vector<8x256xf32>
    %c17_i32 = arith.constant 17 : i32
    %4 = tpu.dynamic_rotate %3 by %c17_i32 dim 1 : vector<8x256xf32>, i32 -> vector<8x256xf32>
    %c0_2 = arith.constant 0 : index
    %c0_3 = arith.constant 0 : index
    %5 = vector.load %arg4[%c0_2, %c0_3] : memref<9x256xf32, #tpu.memory_space<vmem>>, vector<1x256xf32>
    %6 = vector.broadcast %5 : vector<1x256xf32> to vector<8x256xf32>
    %7 = arith.mulf %4, %6 : vector<8x256xf32>
    %c0_4 = arith.constant 0 : index
    %c0_5 = arith.constant 0 : index
    %8 = vector.load %arg6[%c0_4, %c0_5] : memref<72x256xf32, #tpu.memory_space<vmem>>, vector<8x256xf32>
    tpu.vector_store %arg6[%c0_4, %c0_5], %7 {strides = array<i32>} : memref<72x256xf32, #tpu.memory_space<vmem>>, vector<8x256xf32>,
    %c16_i32 = arith.constant 16 : i32
    %9 = tpu.dynamic_rotate %3 by %c16_i32 dim 1 : vector<8x256xf32>, i32 -> vector<8x256xf32>
    %c1 = arith.constant 1 : index
    %c0_6 = arith.constant 0 : index
    %10 = vector.load %arg4[%c1, %c0_6] : memref<9x256xf32, #tpu.memory_space<vmem>>, vector<1x256xf32>
    %11 = vector.broadcast %10 : vector<1x256xf32> to vector<8x256xf32>
    %12 = arith.mulf %9, %11 : vector<8x256xf32>
    %c8 = arith.constant 8 : index
    %c0_7 = arith.constant 0 : index
    %13 = vector.load %arg6[%c8, %c0_7] : memref<72x256xf32, #tpu.memory_space<vmem>>, vector<8x256xf32>
    tpu.vector_store %arg6[%c8, %c0_7], %12 {strides = array<i32>} : memref<72x256xf32, #tpu.memory_space<vmem>>, vector<8x256xf32>,
    %c15_i32 = arith.constant 15 : i32
    %14 = tpu.dynamic_rotate %3 by %c15_i32 dim 1 : vector<8x256xf32>, i32 -> vector<8x256xf32>
    %c2 = arith.constant 2 : index
    %c0_8 = arith.constant 0 : index
    %15 = vector.load %arg4[%c2, %c0_8] : memref<9x256xf32, #tpu.memory_space<vmem>>, vector<1x256xf32>
    %16 = vector.broadcast %15 : vector<1x256xf32> to vector<8x256xf32>
    %17 = arith.mulf %14, %16 : vector<8x256xf32>
    %c16 = arith.constant 16 : index
    %c0_9 = arith.constant 0 : index
    %18 = vector.load %arg6[%c16, %c0_9] : memref<72x256xf32, #tpu.memory_space<vmem>>, vector<8x256xf32>
    tpu.vector_store %arg6[%c16, %c0_9], %17 {strides = array<i32>} : memref<72x256xf32, #tpu.memory_space<vmem>>, vector<8x256xf32>,
    %c1_i32 = arith.constant 1 : i32
    %19 = tpu.dynamic_rotate %3 by %c1_i32 dim 1 : vector<8x256xf32>, i32 -> vector<8x256xf32>
    %c3 = arith.constant 3 : index
    %c0_10 = arith.constant 0 : index
    %20 = vector.load %arg4[%c3, %c0_10] : memref<9x256xf32, #tpu.memory_space<vmem>>, vector<1x256xf32>
    %21 = vector.broadcast %20 : vector<1x256xf32> to vector<8x256xf32>
    %22 = arith.mulf %19, %21 : vector<8x256xf32>
    %c24 = arith.constant 24 : index
    %c0_11 = arith.constant 0 : index
    %23 = vector.load %arg6[%c24, %c0_11] : memref<72x256xf32, #tpu.memory_space<vmem>>, vector<8x256xf32>
    tpu.vector_store %arg6[%c24, %c0_11], %22 {strides = array<i32>} : memref<72x256xf32, #tpu.memory_space<vmem>>, vector<8x256xf32>,
    %c4 = arith.constant 4 : index
    %c0_12 = arith.constant 0 : index
    %24 = vector.load %arg4[%c4, %c0_12] : memref<9x256xf32, #tpu.memory_space<vmem>>, vector<1x256xf32>
    %25 = vector.broadcast %24 : vector<1x256xf32> to vector<8x256xf32>
    %26 = arith.mulf %3, %25 : vector<8x256xf32>
    %c32 = arith.constant 32 : index
    %c0_13 = arith.constant 0 : index
    %27 = vector.load %arg6[%c32, %c0_13] : memref<72x256xf32, #tpu.memory_space<vmem>>, vector<8x256xf32>
    tpu.vector_store %arg6[%c32, %c0_13], %26 {strides = array<i32>} : memref<72x256xf32, #tpu.memory_space<vmem>>, vector<8x256xf32>,
    %c255_i32 = arith.constant 255 : i32
    %28 = tpu.dynamic_rotate %3 by %c255_i32 dim 1 : vector<8x256xf32>, i32 -> vector<8x256xf32>
    %c5 = arith.constant 5 : index
    %c0_14 = arith.constant 0 : index
    %29 = vector.load %arg4[%c5, %c0_14] : memref<9x256xf32, #tpu.memory_space<vmem>>, vector<1x256xf32>
    %30 = vector.broadcast %29 : vector<1x256xf32> to vector<8x256xf32>
    %31 = arith.mulf %28, %30 : vector<8x256xf32>
    %c40 = arith.constant 40 : index
    %c0_15 = arith.constant 0 : index
    %32 = vector.load %arg6[%c40, %c0_15] : memref<72x256xf32, #tpu.memory_space<vmem>>, vector<8x256xf32>
    tpu.vector_store %arg6[%c40, %c0_15], %31 {strides = array<i32>} : memref<72x256xf32, #tpu.memory_space<vmem>>, vector<8x256xf32>,
    %c241_i32 = arith.constant 241 : i32
    %33 = tpu.dynamic_rotate %3 by %c241_i32 dim 1 : vector<8x256xf32>, i32 -> vector<8x256xf32>
    %c6 = arith.constant 6 : index
    %c0_16 = arith.constant 0 : index
    %34 = vector.load %arg4[%c6, %c0_16] : memref<9x256xf32, #tpu.memory_space<vmem>>, vector<1x256xf32>
    %35 = vector.broadcast %34 : vector<1x256xf32> to vector<8x256xf32>
    %36 = arith.mulf %33, %35 : vector<8x256xf32>
    %c48 = arith.constant 48 : index
    %c0_17 = arith.constant 0 : index
    %37 = vector.load %arg6[%c48, %c0_17] : memref<72x256xf32, #tpu.memory_space<vmem>>, vector<8x256xf32>
    tpu.vector_store %arg6[%c48, %c0_17], %36 {strides = array<i32>} : memref<72x256xf32, #tpu.memory_space<vmem>>, vector<8x256xf32>,
    %c240_i32 = arith.constant 240 : i32
    %38 = tpu.dynamic_rotate %3 by %c240_i32 dim 1 : vector<8x256xf32>, i32 -> vector<8x256xf32>
    %c7 = arith.constant 7 : index
    %c0_18 = arith.constant 0 : index
    %39 = vector.load %arg4[%c7, %c0_18] : memref<9x256xf32, #tpu.memory_space<vmem>>, vector<1x256xf32>
    %40 = vector.broadcast %39 : vector<1x256xf32> to vector<8x256xf32>
    %41 = arith.mulf %38, %40 : vector<8x256xf32>
    %c56 = arith.constant 56 : index
    %c0_19 = arith.constant 0 : index
    %42 = vector.load %arg6[%c56, %c0_19] : memref<72x256xf32, #tpu.memory_space<vmem>>, vector<8x256xf32>
    tpu.vector_store %arg6[%c56, %c0_19], %41 {strides = array<i32>} : memref<72x256xf32, #tpu.memory_space<vmem>>, vector<8x256xf32>,
    %c239_i32 = arith.constant 239 : i32
    %43 = tpu.dynamic_rotate %3 by %c239_i32 dim 1 : vector<8x256xf32>, i32 -> vector<8x256xf32>
    %c8_20 = arith.constant 8 : index
    %c0_21 = arith.constant 0 : index
    %44 = vector.load %arg4[%c8_20, %c0_21] : memref<9x256xf32, #tpu.memory_space<vmem>>, vector<1x256xf32>
    %45 = vector.broadcast %44 : vector<1x256xf32> to vector<8x256xf32>
    %46 = arith.mulf %43, %45 : vector<8x256xf32>
    %c64 = arith.constant 64 : index
    %c0_22 = arith.constant 0 : index
    %47 = vector.load %arg6[%c64, %c0_22] : memref<72x256xf32, #tpu.memory_space<vmem>>, vector<8x256xf32>
    tpu.vector_store %arg6[%c64, %c0_22], %46 {strides = array<i32>} : memref<72x256xf32, #tpu.memory_space<vmem>>, vector<8x256xf32>,
    %c0_23 = arith.constant 0 : index
    %c0_24 = arith.constant 0 : index
    %48 = vector.load %arg2[%c0_23, %c0_24] : memref<8x72xbf16, #tpu.memory_space<vmem>>, vector<8x72xbf16>
    %c0_25 = arith.constant 0 : index
    %c0_26 = arith.constant 0 : index
    %49 = vector.load %arg6[%c0_25, %c0_26] : memref<72x256xf32, #tpu.memory_space<vmem>>, vector<72x256xf32>
    %50 = arith.truncf %49 : vector<72x256xf32> to vector<72x256xbf16>
    %cst_27 = arith.constant dense<0.000000e+00> : vector<8x256xf32>
    %51 = tpu.matmul %48, %50, %cst_27 {dimension_numbers = #tpu.dot_dimension_numbers<[1], [0], [0], [1], [0, 0, 1, 1], [], []>} : vector<8x72xbf16>, vector<72x256xbf16>, vector<8x256xf32> -> vector<8x256xf32>
    %c0_28 = arith.constant 0 : index
    %c0_29 = arith.constant 0 : index
    %52 = vector.load %arg3[%c0_28, %c0_29] : memref<8x1xf32, #tpu.memory_space<vmem>>, vector<8x1xf32>
    %53 = vector.broadcast %52 : vector<8x1xf32> to vector<8x256xf32>
    %54 = arith.addf %51, %53 : vector<8x256xf32>
    %c0_30 = arith.constant 0 : index
    %c0_31 = arith.constant 0 : index
    %c0_32 = arith.constant 0 : index
    %55 = vector.load %arg5[%c0_30, %c0_31, %c0_32] : memref<1x8x256xf32, #tpu.memory_space<vmem>>, vector<1x8x256xf32>
    %56 = vector.shape_cast %55 : vector<1x8x256xf32> to vector<8x256xf32>
    %57 = vector.shape_cast %54 : vector<8x256xf32> to vector<1x8x256xf32>
    tpu.vector_store %arg5[%c0_30, %c0_31, %c0_32], %57 {strides = array<i32>} : memref<1x8x256xf32, #tpu.memory_space<vmem>>, vector<1x8x256xf32>,
    return
  }
  func.func @transform_0(%arg0: i32) -> (i32, i32, i32) {
    %c0_i32 = arith.constant 0 : i32
    %c0_i32_0 = arith.constant 0 : i32
    %c0_i32_1 = arith.constant 0 : i32
    return %arg0, %c0_i32, %c0_i32_0 : i32, i32, i32
  }
  func.func @transform_1(%arg0: i32) -> (i32, i32) {
    %c0_i32 = arith.constant 0 : i32
    %c0_i32_0 = arith.constant 0 : i32
    %c0_i32_1 = arith.constant 0 : i32
    return %c0_i32, %c0_i32_0 : i32, i32
  }
  func.func @transform_2(%arg0: i32) -> (i32, i32) {
    %c0_i32 = arith.constant 0 : i32
    %c0_i32_0 = arith.constant 0 : i32
    %c0_i32_1 = arith.constant 0 : i32
    return %c0_i32, %c0_i32_0 : i32, i32
  }
  func.func @transform_3(%arg0: i32) -> (i32, i32) {
    %c0_i32 = arith.constant 0 : i32
    %c0_i32_0 = arith.constant 0 : i32
    %c0_i32_1 = arith.constant 0 : i32
    return %c0_i32, %c0_i32_0 : i32, i32
  }
  func.func @transform_4(%arg0: i32) -> (i32, i32, i32) {
    %c0_i32 = arith.constant 0 : i32
    %c0_i32_0 = arith.constant 0 : i32
    %c0_i32_1 = arith.constant 0 : i32
    return %arg0, %c0_i32, %c0_i32_0 : i32, i32, i32
  }
}

</mosaic_0001>

<llo_original>
// kernel: forward.1
$region0: #{forward.1}
  #allocation0 [shape = 'u32[]', space=smem, size = 0x4, offset = 0x4, fixed_abs, tag = 'smem constant byte address 0x4 - core index']
  #allocation1 [shape = 'u32[72,128]{1,0:T(1,128)}', space=vmem, size = 0x9000, scoped, tag = 'internal scratch']
  #allocation2 [shape = 'f32[72,256]{1,0:T(8,128)}', space=vmem, size = 0x12000, scoped, tag = 'scratch operand']
  %s0 = inlined_call_operand.vmem [shape: f32[2,4,256], index: 0, kind: input, shape index: {}]
  %s1 = inlined_call_operand.vmem [shape: bf16[8,72], index: 1, kind: input, shape index: {}]
  %s2 = inlined_call_operand.vmem [shape: f32[8,1], index: 2, kind: input, shape index: {}]
  %s3 = inlined_call_operand.vmem [shape: f32[9,256], index: 3, kind: input, shape index: {}]
  %s4 = inlined_call_operand.vmem [shape: f32[2,8,256], index: 4, kind: output, shape index: {}]
  %s5 = sld [smem:[#allocation0]]
  $region49: #{forward.1} parent=0
    _
  %s7 = ssub.s32 1, %s5
  %s8 = scalar_select 0, %s7, %s5
  loop: start=0, step=1, limit=4
  $region2: #{forward.1} parent=0 // loop_pre_header
    _
  $region3: #{forward.1} parent=0 // loop_header
    %s10 = sphi 0, %s14
    %p11 = scmp.ge.s32.totalorder %s10, 4
    %s20 = sphi 0, %s22
    %s23 = sphi 0, %s20
    %s24 = sphi 0, %s23
    %s40 = sphi 0, %s24
    %s44 = sphi 0, %s44
    %s46 = sphi 0, %s44
    %s47 = sphi 0, %s46
    %s61 = sphi 0, %s47
    %s65 = sphi 0, %s65
    %s67 = sphi 0, %s65
    %s68 = sphi 0, %s67
    %s82 = sphi 0, %s68
    %s86 = sphi 0, %s86
    %s88 = sphi 0, %s86
    %s89 = sphi 0, %s88
    %s103 = sphi 0, %s89
    %s109 = sphi 0, %s111
    %s112 = sphi 0, %s109
    %s113 = sphi 0, %s112
    %s129 = sphi 0, %s113
  $region4: #{forward.1} parent=0 // loop_header_branch
    %13 = sbr.rel (%p11) target = $region8
  $region5: #{forward.1} parent=0 // loop_body
    %s15 = ssub.s32 %s10, 1
    %s16 = ssub.s32 %s10, 2
    %s17 = sadd.s32 %s10, 1
    %s18 = ssub.s32 %s10, %s17
    %p19 = scmp.eq.s32.totalorder %s18, 0
    %s21 = sadd.s32 %s20, 1
    %s22 = scalar_select %p19, %s20, %s21
    %p25 = pneg %p19
    %p26 = scmp.eq.s32.totalorder %s10, 1
    %p27 = por %p25, %p26
    %p28 = scmp.ne.s32.totalorder %s20, %s23
    %p29 = scmp.eq.s32.totalorder %s10, 0
    %p30 = por %p28, %p29
    %p31 = scmp.ne.s32.totalorder %s20, %s23
    %p32 = scmp.eq.s32.totalorder %s15, 1
    %p33 = por %p31, %p32
    %p34 = scmp.ne.s32.totalorder %s23, %s24
    %p35 = scmp.eq.s32.totalorder %s15, 0
    %p36 = por %p34, %p35
    %p37 = scmp.ne.s32.totalorder %s23, %s24
    %p38 = scmp.eq.s32.totalorder %s16, 1
    %p39 = por %p37, %p38
    %p41 = scmp.ne.s32.totalorder %s24, %s40
    %p42 = scmp.eq.s32.totalorder %s16, 0
    %p43 = por %p41, %p42
    %s45 = sadd.s32 %s44, 1
    %p48 = scmp.eq.s32.totalorder %s10, 1
    %p49 = scmp.ne.s32.totalorder %s44, %s46
    %p50 = scmp.eq.s32.totalorder %s10, 0
    %p51 = por %p49, %p50
    %p52 = scmp.ne.s32.totalorder %s44, %s46
    %p53 = scmp.eq.s32.totalorder %s15, 1
    %p54 = por %p52, %p53
    %p55 = scmp.ne.s32.totalorder %s46, %s47
    %p56 = scmp.eq.s32.totalorder %s15, 0
    %p57 = por %p55, %p56
    %p58 = scmp.ne.s32.totalorder %s46, %s47
    %p59 = scmp.eq.s32.totalorder %s16, 1
    %p60 = por %p58, %p59
    %p62 = scmp.ne.s32.totalorder %s47, %s61
    %p63 = scmp.eq.s32.totalorder %s16, 0
    %p64 = por %p62, %p63
    %s66 = sadd.s32 %s65, 1
    %p69 = scmp.eq.s32.totalorder %s10, 1
    %p70 = scmp.ne.s32.totalorder %s65, %s67
    %p71 = scmp.eq.s32.totalorder %s10, 0
    %p72 = por %p70, %p71
    %p73 = scmp.ne.s32.totalorder %s65, %s67
    %p74 = scmp.eq.s32.totalorder %s15, 1
    %p75 = por %p73, %p74
    %p76 = scmp.ne.s32.totalorder %s67, %s68
    %p77 = scmp.eq.s32.totalorder %s15, 0
    %p78 = por %p76, %p77
    %p79 = scmp.ne.s32.totalorder %s67, %s68
    %p80 = scmp.eq.s32.totalorder %s16, 1
    %p81 = por %p79, %p80
    %p83 = scmp.ne.s32.totalorder %s68, %s82
    %p84 = scmp.eq.s32.totalorder %s16, 0
    %p85 = por %p83, %p84
    %s87 = sadd.s32 %s86, 1
    %p90 = scmp.eq.s32.totalorder %s10, 1
    %p91 = scmp.ne.s32.totalorder %s86, %s88
    %p92 = scmp.eq.s32.totalorder %s10, 0
    %p93 = por %p91, %p92
    %p94 = scmp.ne.s32.totalorder %s86, %s88
    %p95 = scmp.eq.s32.totalorder %s15, 1
    %p96 = por %p94, %p95
    %p97 = scmp.ne.s32.totalorder %s88, %s89
    %p98 = scmp.eq.s32.totalorder %s15, 0
    %p99 = por %p97, %p98
    %p100 = scmp.ne.s32.totalorder %s88, %s89
    %p101 = scmp.eq.s32.totalorder %s16, 1
    %p102 = por %p100, %p101
    %p104 = scmp.ne.s32.totalorder %s89, %s103
    %p105 = scmp.eq.s32.totalorder %s16, 0
    %p106 = por %p104, %p105
    %s107 = ssub.s32 %s10, %s17
    %p108 = scmp.eq.s32.totalorder %s107, 0
    %s110 = sadd.s32 %s109, 1
    %s111 = scalar_select %p108, %s109, %s110
    %p114 = pneg %p108
    %p115 = scmp.eq.s32.totalorder %s10, 1
    %p116 = por %p114, %p115
    %p117 = scmp.ne.s32.totalorder %s109, %s112
    %p118 = scmp.eq.s32.totalorder %s10, 0
    %p119 = por %p117, %p118
    %p120 = scmp.ne.s32.totalorder %s109, %s112
    %p121 = scmp.eq.s32.totalorder %s15, 1
    %p122 = por %p120, %p121
    %p123 = scmp.ne.s32.totalorder %s112, %s113
    %p124 = scmp.eq.s32.totalorder %s15, 0
    %p125 = por %p123, %p124
    %p126 = scmp.ne.s32.totalorder %s112, %s113
    %p127 = scmp.eq.s32.totalorder %s16, 1
    %p128 = por %p126, %p127
    %p130 = scmp.ne.s32.totalorder %s113, %s129
    %p131 = scmp.eq.s32.totalorder %s16, 0
    %p132 = por %p130, %p131
    %p133 = scmp.le.s32.totalorder 1, %s10
    %p134 = scmp.lt.s32.totalorder %s10, 3
    %p135 = pnand %p133, %p134
    %p136 = pneg %p135
    // Predicated region
    $region9: #{forward.1} parent=5 // pred_check
      _
    $region10: #{forward.1} parent=5 // pred_check_branch
      %138 = sbr.rel (%p135) target = $region12
    $region11: #{forward.1} parent=5 // pred_region
      %s139 = ssub.s32 %s10, 1
      // Predicated region
      $region13: #{forward.1} parent=11 // pred_check
        %p140 = pneg %p57
      $region14: #{forward.1} parent=11 // pred_check_branch
        %142 = sbr.rel (%p140) target = $region16
      $region15: #{forward.1} parent=11 // pred_region
        _
      $region16: #{forward.1} parent=11 // pred_fallthru
        _
      // Predicated region
      $region17: #{forward.1} parent=11 // pred_check
        %p143 = pneg %p78
      $region18: #{forward.1} parent=11 // pred_check_branch
        %145 = sbr.rel (%p143) target = $region20
      $region19: #{forward.1} parent=11 // pred_region
        _
      $region20: #{forward.1} parent=11 // pred_fallthru
        _
      // Predicated region
      $region21: #{forward.1} parent=11 // pred_check
        %p146 = pneg %p99
      $region22: #{forward.1} parent=11 // pred_check_branch
        %148 = sbr.rel (%p146) target = $region24
      $region23: #{forward.1} parent=11 // pred_region
        _
      $region24: #{forward.1} parent=11 // pred_fallthru
        _
    $region12: #{forward.1} parent=5 // pred_fallthru
      _
    %p149 = scmp.lt.s32.totalorder %s10, 2
    // Predicated region
    $region25: #{forward.1} parent=5 // pred_check
      %p150 = pneg %p149
    $region26: #{forward.1} parent=5 // pred_check_branch
      %152 = sbr.rel (%p150) target = $region28
    $region27: #{forward.1} parent=5 // pred_region
      // Predicated region
      $region29: #{forward.1} parent=27 // pred_check
        %p153 = pneg %p30
      $region30: #{forward.1} parent=27 // pred_check_branch
        %155 = sbr.rel (%p153) target = $region32
      $region31: #{forward.1} parent=27 // pred_region
        %p156 = scmp.lt.s32.totalorder %s10, 1
        %s157 = scalar_select %p156, %s10, 1
        %s158 = smul.addr %s157, 2
        %s159 = smul.addr %s158, 4
        %s160 = scalar_lea.vmem %s0, %s159
      $region32: #{forward.1} parent=27 // pred_fallthru
        _
    $region28: #{forward.1} parent=5 // pred_fallthru
      _
    %p161 = scmp.le.s32.totalorder 1, %s10
    %p162 = scmp.lt.s32.totalorder %s10, 3
    %p163 = pnand %p161, %p162
    %p164 = pneg %p163
    // Predicated region
    $region33: #{forward.1} parent=5 // pred_check
      _
    $region34: #{forward.1} parent=5 // pred_check_branch
      %166 = sbr.rel (%p163) target = $region36
    $region35: #{forward.1} parent=5 // pred_region
      %s167 = ssub.s32 %s10, 1
      %p168 = scmp.lt.s32.totalorder %s15, 1
      %s169 = scalar_select %p168, %s15, 1
      %s170 = smul.addr %s169, 2
      %s171 = smul.addr %s170, 4
      %s172 = scalar_lea.vmem %s0, %s171
      %p173 = pneg %p36
      %p174 = pneg %p33
      %p175 = pneg %p57
      %p176 = pneg %p54
      %p177 = pneg %p78
      %p178 = pneg %p75
      %p179 = pneg %p99
      %p180 = pneg %p96
      %p181 = pneg %p125
      %p182 = pneg %p122
      %p183 = scmp.lt.s32.totalorder %s15, 1
      %s184 = scalar_select %p183, %s15, 1
      %s185 = smul.addr %s184, 2
      %s186 = smul.addr %s185, 8
      %s187 = scalar_lea.vmem %s4, %s186
      %p188 = scmp.lt.s32.totalorder %s15, 1
      %s189 = scalar_select %p188, %s15, 1
      %s190 = smul.addr %s189, 2
      %s191 = smul.addr %s190, 4
      %s192 = scalar_lea.vmem %s0, %s191
      %p193 = scmp.lt.s32.totalorder %s15, 1
      %s194 = scalar_select %p193, %s15, 1
      %s195 = smul.addr %s194, 2
      %s196 = smul.addr %s195, 8
      %s197 = scalar_lea.vmem %s4, %s196
      %v199 = vld [vmem:[%s192] sm:$0xff]
      %201 = vst [vmem:[#allocation1] ss:$2 sm:$0xff] %v199
      %v202 = vld.sshfl [vmem:[#allocation1] sm:$0xff pattern:$0x75316420]
      %v203 = vld.sshfl [vmem:[#allocation1 + $0x8] sm:$0xff pattern:$0x75316420]
      %vm206 = vcmask 1043456
      %v207 = vsel %vm206, %v202, 0.0
      %v208 = vsel %vm206, %v203, 0.0
      %209 = vrot.lane.b32.xlu0 %v207, 17
      %v210 = vpop.permute.xlu0 %209
      %211 = vrot.lane.b32.xlu0 %v208, 17
      %v212 = vpop.permute.xlu0 %211
      %v213 = vlaneseq
      %v214 = vand.u32 %v213, 127
      %vm215 = vcmp.lt.s32.totalorder %v214, 17
      %v216 = vsel %vm215, %v210, %v212
      %v217 = vsel %vm215, %v212, %v210
      %v218 = vld [vmem:[%s3] ss:$8 sm:$0x3]
      %v220 = vperm.slane %v218, 0
      %v221 = vperm.slane %v218, 1
      %v224 = vmul.f32 %v217, %v220
      %v225 = vmul.f32 %v216, %v221
      %226 = vst [vmem:[#allocation2] sm:$0xff] %v224
      %227 = vst [vmem:[#allocation2 + $0x8] sm:$0xff] %v225
      %228 = vrot.lane.b32.xlu0 %v207, 16
      %v229 = vpop.permute.xlu0 %228
      %230 = vrot.lane.b32.xlu0 %v208, 16
      %v231 = vpop.permute.xlu0 %230
      %vm232 = vcmp.lt.s32.totalorder %v214, 16
      %v233 = vsel %vm232, %v229, %v231
      %v234 = vsel %vm232, %v231, %v229
      %s235 = scalar_lea.vmem %s3, 1
      %v236 = vld [vmem:[%s235] ss:$8 sm:$0x3]
      %v238 = vperm.slane %v236, 0
      %v239 = vperm.slane %v236, 1
      %v242 = vmul.f32 %v234, %v238
      %v243 = vmul.f32 %v233, %v239
      %244 = vst [vmem:[#allocation2 + $0x10] sm:$0xff] %v242
      %245 = vst [vmem:[#allocation2 + $0x18] sm:$0xff] %v243
      %246 = vrot.lane.b32.xlu0 %v207, 15
      %v247 = vpop.permute.xlu0 %246
      %248 = vrot.lane.b32.xlu0 %v208, 15
      %v249 = vpop.permute.xlu0 %248
      %vm250 = vcmp.lt.s32.totalorder %v214, 15
      %v251 = vsel %vm250, %v247, %v249
      %v252 = vsel %vm250, %v249, %v247
      %s253 = scalar_lea.vmem %s3, 2
      %v254 = vld [vmem:[%s253] ss:$8 sm:$0x3]
      %v256 = vperm.slane %v254, 0
      %v257 = vperm.slane %v254, 1
      %v260 = vmul.f32 %v252, %v256
      %v261 = vmul.f32 %v251, %v257
      %262 = vst [vmem:[#allocation2 + $0x20] sm:$0xff] %v260
      %263 = vst [vmem:[#allocation2 + $0x28] sm:$0xff] %v261
      %264 = vrot.lane.b32.xlu0 %v207, 1
      %v265 = vpop.permute.xlu0 %264
      %266 = vrot.lane.b32.xlu0 %v208, 1
      %v267 = vpop.permute.xlu0 %266
      %vm268 = vcmp.lt.s32.totalorder %v214, 1
      %v269 = vsel %vm268, %v265, %v267
      %v270 = vsel %vm268, %v267, %v265
      %s271 = scalar_lea.vmem %s3, 3
      %v272 = vld [vmem:[%s271] ss:$8 sm:$0x3]
      %v274 = vperm.slane %v272, 0
      %v275 = vperm.slane %v272, 1
      %v278 = vmul.f32 %v270, %v274
      %v279 = vmul.f32 %v269, %v275
      %280 = vst [vmem:[#allocation2 + $0x30] sm:$0xff] %v278
      %281 = vst [vmem:[#allocation2 + $0x38] sm:$0xff] %v279
      %s282 = scalar_lea.vmem %s3, 4
      %v283 = vld [vmem:[%s282] ss:$8 sm:$0x3]
      %v285 = vperm.slane %v283, 0
      %v286 = vperm.slane %v283, 1
      %v289 = vmul.f32 %v207, %v285
      %v290 = vmul.f32 %v208, %v286
      %291 = vst [vmem:[#allocation2 + $0x40] sm:$0xff] %v289
      %292 = vst [vmem:[#allocation2 + $0x48] sm:$0xff] %v290
      %293 = vrot.lane.b32.xlu0 %v207, 127
      %v294 = vpop.permute.xlu0 %293
      %295 = vrot.lane.b32.xlu0 %v208, 127
      %v296 = vpop.permute.xlu0 %295
      %vm297 = vcmp.lt.s32.totalorder %v214, 127
      %v298 = vsel %vm297, %v294, %v296
      %v299 = vsel %vm297, %v296, %v294
      %s300 = scalar_lea.vmem %s3, 5
      %v301 = vld [vmem:[%s300] ss:$8 sm:$0x3]
      %v303 = vperm.slane %v301, 0
      %v304 = vperm.slane %v301, 1
      %v307 = vmul.f32 %v298, %v303
      %v308 = vmul.f32 %v299, %v304
      %309 = vst [vmem:[#allocation2 + $0x50] sm:$0xff] %v307
      %310 = vst [vmem:[#allocation2 + $0x58] sm:$0xff] %v308
      %311 = vrot.lane.b32.xlu0 %v207, 113
      %v312 = vpop.permute.xlu0 %311
      %313 = vrot.lane.b32.xlu0 %v208, 113
      %v314 = vpop.permute.xlu0 %313
      %vm315 = vcmp.lt.s32.totalorder %v214, 113
      %v316 = vsel %vm315, %v312, %v314
      %v317 = vsel %vm315, %v314, %v312
      %s318 = scalar_lea.vmem %s3, 6
      %v319 = vld [vmem:[%s318] ss:$8 sm:$0x3]
      %v321 = vperm.slane %v319, 0
      %v322 = vperm.slane %v319, 1
      %v325 = vmul.f32 %v316, %v321
      %v326 = vmul.f32 %v317, %v322
      %327 = vst [vmem:[#allocation2 + $0x60] sm:$0xff] %v325
      %328 = vst [vmem:[#allocation2 + $0x68] sm:$0xff] %v326
      %329 = vrot.lane.b32.xlu0 %v207, 112
      %v330 = vpop.permute.xlu0 %329
      %331 = vrot.lane.b32.xlu0 %v208, 112
      %v332 = vpop.permute.xlu0 %331
      %vm333 = vcmp.lt.s32.totalorder %v214, 112
      %v334 = vsel %vm333, %v330, %v332
      %v335 = vsel %vm333, %v332, %v330
      %s336 = scalar_lea.vmem %s3, 7
      %v337 = vld [vmem:[%s336] ss:$8 sm:$0x3]
      %v339 = vperm.slane %v337, 0
      %v340 = vperm.slane %v337, 1
      %v343 = vmul.f32 %v334, %v339
      %v344 = vmul.f32 %v335, %v340
      %345 = vst [vmem:[#allocation2 + $0x70] sm:$0xff] %v343
      %346 = vst [vmem:[#allocation2 + $0x78] sm:$0xff] %v344
      %347 = vrot.lane.b32.xlu0 %v207, 111
      %v348 = vpop.permute.xlu0 %347
      %349 = vrot.lane.b32.xlu0 %v208, 111
      %v350 = vpop.permute.xlu0 %349
      %vm351 = vcmp.lt.s32.totalorder %v214, 111
      %v352 = vsel %vm351, %v348, %v350
      %v353 = vsel %vm351, %v350, %v348
      %s354 = scalar_lea.vmem %s3, 16
      %v355 = vld [vmem:[%s354] ss:$8 sm:$0x3]
      %v357 = vperm.slane %v355, 0
      %v358 = vperm.slane %v355, 1
      %v361 = vmul.f32 %v352, %v357
      %v362 = vmul.f32 %v353, %v358
      %363 = vst [vmem:[#allocation2 + $0x80] sm:$0xff] %v361
      %364 = vst [vmem:[#allocation2 + $0x88] sm:$0xff] %v362
      %v365 = vld [vmem:[%s1] sm:$0xf]
      %v366 = vld [vmem:[#allocation2] sm:$0xff]
      %v367 = vld [vmem:[#allocation2 + $0x8] sm:$0xff]
      %v368 = vld [vmem:[#allocation2 + $0x10] sm:$0xff]
      %v369 = vld [vmem:[#allocation2 + $0x18] sm:$0xff]
      %v370 = vld [vmem:[#allocation2 + $0x20] sm:$0xff]
      %v371 = vld [vmem:[#allocation2 + $0x28] sm:$0xff]
      %v372 = vld [vmem:[#allocation2 + $0x30] sm:$0xff]
      %v373 = vld [vmem:[#allocation2 + $0x38] sm:$0xff]
      %v374 = vld [vmem:[#allocation2 + $0x40] sm:$0xff]
      %v375 = vld [vmem:[#allocation2 + $0x48] sm:$0xff]
      %v376 = vld [vmem:[#allocation2 + $0x50] sm:$0xff]
      %v377 = vld [vmem:[#allocation2 + $0x58] sm:$0xff]
      %v378 = vld [vmem:[#allocation2 + $0x60] sm:$0xff]
      %v379 = vld [vmem:[#allocation2 + $0x68] sm:$0xff]
      %v380 = vld [vmem:[#allocation2 + $0x70] sm:$0xff]
      %v381 = vld [vmem:[#allocation2 + $0x78] sm:$0xff]
      %v382 = vld [vmem:[#allocation2 + $0x80] sm:$0xff]
      %v383 = vld [vmem:[#allocation2 + $0x88] sm:$0xff]
      %v384 = vpack.c.bf16 %v368, %v366
      %v385 = vpack.c.bf16 %v369, %v367
      %v386 = vpack.c.bf16 %v372, %v370
      %v387 = vpack.c.bf16 %v373, %v371
      %v388 = vpack.c.bf16 %v376, %v374
      %v389 = vpack.c.bf16 %v377, %v375
      %v390 = vpack.c.bf16 %v380, %v378
      %v391 = vpack.c.bf16 %v381, %v379
      %v392 = vpack.c.bf16 %v382, %v382
      %v393 = vpack.c.bf16 %v383, %v383
      %v394 = vld [vmem:[%s2] sm:$0xff]
      %396 = vset.pattern.permute.xlu0 0
      %397 = vperm.xlu0 %396, %v394
      %v398 = vpop.permute.xlu0 %397
      %vm400 = vcmask 588800
      %v402 = vsel %vm400, %v365, 0
      %v405 = vsel %vm206, %v392, 0
      %v408 = vsel %vm206, %v393, 0
      %410 = vmatpush.bf16.msra.mxu0 0
      %411 = vmatpush.bf16.msra.mxu0 0
      %412 = vmatpush.bf16.msra.mxu0 0
      %413 = vmatpush.bf16.msra.mxu0 %v405
      %414 = vmatpush.bf16.msra.mxu0 %v390
      %415 = vmatpush.bf16.msra.mxu0 %v388
      %416 = vmatpush.bf16.msra.mxu0 %v386
      %417 = vmatpush.bf16.msra.mxu0 %v384
      %418 = vmatmul.bf16.gmra.mxu0 %v402
      %v419 = vpop.f32.mrf.mxu0
      %v420 = vadd.f32 %v398, %v419
      %v421 = vpop.f32.mrf.mxu0
      %422 = vdwg.mxu0
      %423 = vmatpush.bf16.msra.mxu0 0
      %424 = vmatpush.bf16.msra.mxu0 0
      %425 = vmatpush.bf16.msra.mxu0 0
      %426 = vmatpush.bf16.msra.mxu0 %v408
      %427 = vmatpush.bf16.msra.mxu0 %v391
      %428 = vmatpush.bf16.msra.mxu0 %v389
      %429 = vmatpush.bf16.msra.mxu0 %v387
      %430 = vmatpush.bf16.msra.mxu0 %v385
      %431 = vmatmul.bf16.gmra.mxu0 %v402
      %v432 = vpop.f32.mrf.mxu0
      %v433 = vadd.f32 %v398, %v432
      %v434 = vpop.f32.mrf.mxu0
      %435 = vdwg.mxu0
      %436 = vst [vmem:[%s197] sm:$0xff] %v420
      %437 = vst [vmem:[%s197 + $0x8] sm:$0xff] %v433
      %p438 = scmp.lt.s32.totalorder %s15, 1
      %s439 = scalar_select %p438, %s15, 1
      %s440 = smul.addr %s439, 2
      %s441 = smul.addr %s440, 8
      %s442 = scalar_lea.vmem %s4, %s441
      // Predicated region
      $region37: #{forward.1} parent=35 // pred_check
        %p443 = pneg %p122
      $region38: #{forward.1} parent=35 // pred_check_branch
        %445 = sbr.rel (%p443) target = $region40
      $region39: #{forward.1} parent=35 // pred_region
        _
      $region40: #{forward.1} parent=35 // pred_fallthru
        _
    $region36: #{forward.1} parent=5 // pred_fallthru
      _
    %p446 = scmp.le.s32.totalorder 2, %s10
    // Predicated region
    $region41: #{forward.1} parent=5 // pred_check
      %p447 = pneg %p446
    $region42: #{forward.1} parent=5 // pred_check_branch
      %449 = sbr.rel (%p447) target = $region44
    $region43: #{forward.1} parent=5 // pred_region
      %s450 = ssub.s32 %s10, 2
      // Predicated region
      $region45: #{forward.1} parent=43 // pred_check
        %p451 = pneg %p128
      $region46: #{forward.1} parent=43 // pred_check_branch
        %453 = sbr.rel (%p451) target = $region48
      $region47: #{forward.1} parent=43 // pred_region
        %p454 = scmp.lt.s32.totalorder %s16, 1
        %s455 = scalar_select %p454, %s16, 1
        %s456 = smul.addr %s455, 2
        %s457 = smul.addr %s456, 8
        %s458 = scalar_lea.vmem %s4, %s457
      $region48: #{forward.1} parent=43 // pred_fallthru
        _
    $region44: #{forward.1} parent=5 // pred_fallthru
      _
  $region6: #{forward.1} parent=0 // loop_footer
    %s14 = sadd.s32 1, %s10
  $region7: #{forward.1} parent=0 // loop_footer_branch
    %9 = sbr.rel target = $region3
  $region8: #{forward.1} parent=0 // loop_exit
    _

</llo_original>
